<compile_context>
chip_gen: v6e
topology: v6e:2x2x1
jax: 0.10.0
libtpu: 0.0.40
codegen_flags: <defaults>
</compile_context>

<pallas_src>
import jax
import jax.numpy as jnp
import numpy as np
from jax.experimental import pallas as pl
from jax.experimental.pallas import tpu as pltpu

BN_EPS = 1e-5


# ------------------------------ Pallas kernel -------------------------------
def conv_bn_relu_kernel(x_ref, w_ref, b_ref, o_ref):
    """One (batch-tile, lane-tile) block of 1x1 Conv2d + folded BN + ReLU.

    x_ref: (tb, C_in, TL)  bf16 activations (channels on sublanes, pixels on lanes)
    w_ref: (C_out, C_in)   bf16 conv weight with BN scale folded in
    b_ref: (C_out, 1)      f32 folded BN shift
    o_ref: (tb, C_out, TL) bf16 output
    """
    w = w_ref[...]
    shift = b_ref[...]
    # tb is a small static block dim -> unrolled 2-D MXU matmuls (no 3-D
    # dot_general, no layout transposes), f32 accumulation, f32 epilogue.
    for b in range(x_ref.shape[0]):
        h = jnp.dot(w, x_ref[b], preferred_element_type=jnp.float32)  # (C_out, TL)
        o_ref[b] = jnp.maximum(h + shift, 0.0).astype(o_ref.dtype)


# ------------------------------ tiling policy --------------------------------
def _choose_tiling(B, c_in, c_out, L, in_bytes, out_bytes,
                   budget_bytes=12 * 1024 * 1024, max_tb=8):
    """Pick (batch-tile, #batch-steps, lane-tile, #lane-steps).

    One in+out block stays within `budget_bytes`; double-buffered blocks plus
    the (double-buffered) weight stay well under the 48 MiB vmem limit we set,
    which is safe on v5e/v6e (128 MiB physical) and v7x (64 MiB).
    """
    per_lane = c_in * in_bytes + c_out * out_bytes      # bytes / lane / batch row
    # Fold up to `max_tb` batch rows into a block as long as a lane-dense
    # (>=128-lane) tile still fits the budget.
    tb = min(B, max_tb)
    while tb > 1 and tb * per_lane * 128 > budget_bytes:
        tb //= 2
    cap = 4096 if (c_in + c_out) <= 256 else 2048
    tl = min(budget_bytes // (tb * per_lane), cap)
    tl = max(128, (tl // 128) * 128)
    if L <= tl:
        tl = L                        # single full-extent lane block (always legal)
    nb, nt = pl.cdiv(B, tb), pl.cdiv(L, tl)
    # v7x has 2 TensorCores: make sure the ("parallel","parallel") grid has at
    # least 2 steps whenever the work can be split lane-densely.
    if nb * nt == 1 and L >= 256:
        tl = ((pl.cdiv(L, 2) + 127) // 128) * 128
        nt = pl.cdiv(L, tl)
    return tb, nb, tl, nt


# ------------------------------ branch wrapper -------------------------------
def convert_branch_pallas(x, w_folded, shift):
    """x: (B, C_in, H, W) -> ReLU(BN(Conv2d_1x1(x))) : (B, C_out, H, W) bf16."""
    B, C_in, H, W = x.shape
    C_out = w_folded.shape[0]
    L = H * W

    x = x.astype(jnp.bfloat16)
    out_dtype = jnp.bfloat16
    x2 = x.reshape(B, C_in, L)            # free reshape (row-major contiguous)

    tb, nb, tl, nt = _choose_tiling(B, C_in, C_out, L, in_bytes=2, out_bytes=2)

    grid_spec = pltpu.PrefetchScalarGridSpec(
        num_scalar_prefetch=0,
        grid=(nb, nt),
        in_specs=[
            pl.BlockSpec((tb, C_in, tl), lambda b, t: (b, 0, t)),
            pl.BlockSpec((C_out, C_in), lambda b, t: (0, 0)),
            pl.BlockSpec((C_out, 1), lambda b, t: (0, 0)),
        ],
        out_specs=pl.BlockSpec((tb, C_out, tl), lambda b, t: (b, 0, t)),
    )
    cost = pl.CostEstimate(
        flops=2 * B * C_out * C_in * L,
        transcendentals=0,
        bytes_accessed=(B * C_in * L * 2 + B * C_out * L * 2
                        + C_out * C_in * 2 + C_out * 4),
    )
    # Non-divisible grids are fine: boundary blocks are masked on store and the
    # op is pointwise per lane / per batch row, so OOB data is never consumed.
    out = pl.pallas_call(
        conv_bn_relu_kernel,
        out_shape=jax.ShapeDtypeStruct((B, C_out, L), out_dtype),
        grid_spec=grid_spec,
        compiler_params=pltpu.CompilerParams(
            dimension_semantics=("parallel", "parallel"),
            vmem_limit_bytes=48 * 1024 * 1024),
        cost_estimate=cost,
    )(x2, w_folded, shift)

    return out.reshape(B, C_out, H, W)


def convert_layer_forward(list_x, folded_params):
    """Pallas equivalent of ConvertLayer.forward: one branch per input map."""
    return [convert_branch_pallas(x, w, b)
            for x, (w, b) in zip(list_x, folded_params)]


# ---------------------------- parameter handling -----------------------------
def make_branch_params(key, c_in, c_out):
    kw, kg, kb, km, kv = jax.random.split(key, 5)
    w = 0.1 * jax.random.normal(kw, (c_out, c_in), jnp.float32)   # Conv2d 1x1, bias=False
    gamma = 1.0 + 0.1 * jax.random.normal(kg, (c_out,), jnp.float32)
    beta = 0.1 * jax.random.normal(kb, (c_out,), jnp.float32)
    mean = 0.1 * jax.random.normal(km, (c_out,), jnp.float32)
    var = 1.0 + 0.1 * jax.random.uniform(kv, (c_out,), jnp.float32)
    return w, gamma, beta, mean, var


def fold_bn_into_conv(w, gamma, beta, mean, var, eps=BN_EPS):
    """Fold eval-mode BatchNorm2d into the bias-free 1x1 conv weight (bf16)."""
    scale = gamma / jnp.sqrt(var + eps)
    w_folded = (w * scale[:, None]).astype(jnp.bfloat16)
    shift = ((beta - mean * scale)[:, None]).astype(jnp.float32)
    return w_folded, shift


# ------------------------------ pure-JAX reference ---------------------------
def convert_branch_ref(x, w, gamma, beta, mean, var, eps=BN_EPS):
    x = x.astype(jnp.float32)
    h = jnp.einsum('oc,bchw->bohw', w, x,
                   precision=jax.lax.Precision.HIGHEST)
    scale = gamma / jnp.sqrt(var + eps)
    shift = beta - mean * scale
    h = h * scale[None, :, None, None] + shift[None, :, None, None]
    return jnp.maximum(h, 0.0)


# ------------------------------------ main -----------------------------------
if __name__ == "__main__":
    key = jax.random.PRNGKey(0)

    # Small ConvertLayer config: list_k = [in_channels_per_scale, out_channels_per_scale]
    list_k = [[16, 32, 64], [16, 16, 32]]
    spatial = [(16, 16), (16, 16), (8, 8)]
    B = 2

    keys = jax.random.split(key, 2 * len(list_k[0]))
    list_x, raw_params, folded_params = [], [], []
    for i, (c_in, c_out) in enumerate(zip(list_k[0], list_k[1])):
        H, W = spatial[i]
        x = jax.random.normal(keys[2 * i], (B, c_in, H, W), jnp.float32)
        # Activations arrive in bf16 (half the HBM bytes into the kernel).
        list_x.append(x.astype(jnp.bfloat16))
        p = make_branch_params(keys[2 * i + 1], c_in, c_out)
        raw_params.append(p)
        folded_params.append(fold_bn_into_conv(*p))

    outs = convert_layer_forward(list_x, folded_params)
    outs = jax.block_until_ready(outs)

    for i, (x, p, out) in enumerate(zip(list_x, raw_params, outs)):
        assert out.shape == (B, list_k[1][i], *spatial[i])
        ref = convert_branch_ref(x, *p)
        np.testing.assert_allclose(np.asarray(out, dtype=np.float32),
                                   np.asarray(ref),
                                   rtol=2e-2, atol=2e-2)

    print("KERNEL_OK")
</pallas_src>

<mosaic_0001>
module attributes {stable_mosaic.version = 11 : i64} {
  func.func @conv_bn_relu_kernel(%arg0: i32, %arg1: i32, %arg2: memref<2x16x128xbf16, #tpu.memory_space<vmem>>, %arg3: memref<16x16xbf16, #tpu.memory_space<vmem>>, %arg4: memref<16x1xf32, #tpu.memory_space<vmem>>, %arg5: memref<2x16x128xbf16, #tpu.memory_space<vmem>>) attributes {dimension_semantics = [#tpu.dimension_semantics<parallel>, #tpu.dimension_semantics<parallel>], iteration_bounds = array<i64: 1, 2>, scalar_prefetch = 0 : i64, scratch_operands = 0 : i64, tpu.core_type = #tpu.core_type<tc>, window_params = [{transform_indices = @transform_0, window_bounds = array<i64: 2, 16, 128>}, {pipeline_mode = #tpu.pipeline_mode<synchronous>, transform_indices = @transform_1, window_bounds = array<i64: 16, 16>}, {pipeline_mode = #tpu.pipeline_mode<synchronous>, transform_indices = @transform_2, window_bounds = array<i64: 16, 1>}, {transform_indices = @transform_3, window_bounds = array<i64: 2, 16, 128>}]} {
    %c0 = arith.constant 0 : index
    %c0_0 = arith.constant 0 : index
    %0 = vector.load %arg3[%c0, %c0_0] : memref<16x16xbf16, #tpu.memory_space<vmem>>, vector<16x16xbf16>
    %c0_1 = arith.constant 0 : index
    %c0_2 = arith.constant 0 : index
    %1 = vector.load %arg4[%c0_1, %c0_2] : memref<16x1xf32, #tpu.memory_space<vmem>>, vector<16x1xf32>
    %c0_3 = arith.constant 0 : index
    %c0_4 = arith.constant 0 : index
    %c0_5 = arith.constant 0 : index
    %2 = vector.load %arg2[%c0_3, %c0_4, %c0_5] : memref<2x16x128xbf16, #tpu.memory_space<vmem>>, vector<1x16x128xbf16>
    %3 = vector.shape_cast %2 : vector<1x16x128xbf16> to vector<16x128xbf16>
    %cst = arith.constant dense<0.000000e+00> : vector<16x128xf32>
    %4 = tpu.matmul %0, %3, %cst {dimension_numbers = #tpu.dot_dimension_numbers<[1], [0], [0], [1], [0, 0, 1, 1], [], []>} : vector<16x16xbf16>, vector<16x128xbf16>, vector<16x128xf32> -> vector<16x128xf32>
    %5 = vector.broadcast %1 : vector<16x1xf32> to vector<16x128xf32>
    %6 = arith.addf %4, %5 : vector<16x128xf32>
    %cst_6 = arith.constant 0.000000e+00 : f32
    %7 = vector.broadcast %cst_6 : f32 to vector<16x128xf32>
    %8 = arith.maximumf %6, %7 : vector<16x128xf32>
    %9 = arith.truncf %8 : vector<16x128xf32> to vector<16x128xbf16>
    %c0_7 = arith.constant 0 : index
    %c0_8 = arith.constant 0 : index
    %c0_9 = arith.constant 0 : index
    %10 = vector.load %arg5[%c0_7, %c0_8, %c0_9] : memref<2x16x128xbf16, #tpu.memory_space<vmem>>, vector<1x16x128xbf16>
    %11 = vector.shape_cast %10 : vector<1x16x128xbf16> to vector<16x128xbf16>
    %12 = vector.shape_cast %9 : vector<16x128xbf16> to vector<1x16x128xbf16>
    tpu.vector_store %arg5[%c0_7, %c0_8, %c0_9], %12 {strides = array<i32>} : memref<2x16x128xbf16, #tpu.memory_space<vmem>>, vector<1x16x128xbf16>,
    %c1 = arith.constant 1 : index
    %c0_10 = arith.constant 0 : index
    %c0_11 = arith.constant 0 : index
    %13 = vector.load %arg2[%c1, %c0_10, %c0_11] : memref<2x16x128xbf16, #tpu.memory_space<vmem>>, vector<1x16x128xbf16>
    %14 = vector.shape_cast %13 : vector<1x16x128xbf16> to vector<16x128xbf16>
    %cst_12 = arith.constant dense<0.000000e+00> : vector<16x128xf32>
    %15 = tpu.matmul %0, %14, %cst_12 {dimension_numbers = #tpu.dot_dimension_numbers<[1], [0], [0], [1], [0, 0, 1, 1], [], []>} : vector<16x16xbf16>, vector<16x128xbf16>, vector<16x128xf32> -> vector<16x128xf32>
    %16 = vector.broadcast %1 : vector<16x1xf32> to vector<16x128xf32>
    %17 = arith.addf %15, %16 : vector<16x128xf32>
    %cst_13 = arith.constant 0.000000e+00 : f32
    %18 = vector.broadcast %cst_13 : f32 to vector<16x128xf32>
    %19 = arith.maximumf %17, %18 : vector<16x128xf32>
    %20 = arith.truncf %19 : vector<16x128xf32> to vector<16x128xbf16>
    %c1_14 = arith.constant 1 : index
    %c0_15 = arith.constant 0 : index
    %c0_16 = arith.constant 0 : index
    %21 = vector.load %arg5[%c1_14, %c0_15, %c0_16] : memref<2x16x128xbf16, #tpu.memory_space<vmem>>, vector<1x16x128xbf16>
    %22 = vector.shape_cast %21 : vector<1x16x128xbf16> to vector<16x128xbf16>
    %23 = vector.shape_cast %20 : vector<16x128xbf16> to vector<1x16x128xbf16>
    tpu.vector_store %arg5[%c1_14, %c0_15, %c0_16], %23 {strides = array<i32>} : memref<2x16x128xbf16, #tpu.memory_space<vmem>>, vector<1x16x128xbf16>,
    return
  }
  func.func @transform_0(%arg0: i32, %arg1: i32) -> (i32, i32, i32) {
    %c0_i32 = arith.constant 0 : i32
    %c0_i32_0 = arith.constant 0 : i32
    return %arg0, %c0_i32, %arg1 : i32, i32, i32
  }
  func.func @transform_1(%arg0: i32, %arg1: i32) -> (i32, i32) {
    %c0_i32 = arith.constant 0 : i32
    %c0_i32_0 = arith.constant 0 : i32
    %c0_i32_1 = arith.constant 0 : i32
    return %c0_i32, %c0_i32_0 : i32, i32
  }
  func.func @transform_2(%arg0: i32, %arg1: i32) -> (i32, i32) {
    %c0_i32 = arith.constant 0 : i32
    %c0_i32_0 = arith.constant 0 : i32
    %c0_i32_1 = arith.constant 0 : i32
    return %c0_i32, %c0_i32_0 : i32, i32
  }
  func.func @transform_3(%arg0: i32, %arg1: i32) -> (i32, i32, i32) {
    %c0_i32 = arith.constant 0 : i32
    %c0_i32_0 = arith.constant 0 : i32
    return %arg0, %c0_i32, %arg1 : i32, i32, i32
  }
}

</mosaic_0001>

<llo_original>
// kernel: tpu_custom_call.1
$region0: #{tpu_custom_call.1}
  #allocation0 [shape = 'u32[]', space=smem, size = 0x4, offset = 0x4, fixed_abs, tag = 'smem constant byte address 0x4 - core index']
  #allocation1 [shape = 'u32[144,128]{1,0:T(1,128)}', space=vmem, size = 0x12000, scoped, tag = 'internal scratch']
  %s0 = inlined_call_operand.hbm [shape: bf16[2,16,256], index: 0, kind: input, shape index: {}]
  %s1 = inlined_call_operand.vmem [shape: bf16[16,16], index: 1, kind: input, shape index: {}]
  %s2 = inlined_call_operand.vmem [shape: f32[16,1], index: 2, kind: input, shape index: {}]
  %s3 = inlined_call_operand.hbm [shape: bf16[2,16,256], index: 3, kind: output, shape index: {}]
  %s4 = sld [smem:[#allocation0]]
  $region49: #{tpu_custom_call.1} parent=0
    _
  %s6 = ssub.s32 1, %s4
  %s7 = scalar_select 0, %s6, %s4
  $region1: #{tpu_custom_call.1} parent=0
    #allocation2 [shape = 'u8[16384]{0}', space=vmem, size = 0x4000, scoped, tag = 'input window, operand 0']
    #allocation3 [shape = 's32[2]{0}', space=sflag, size = 0x8, scoped, tag = 'scoped memory for tpu_custom_call.1']
    #allocation4 [shape = 's32[2]{0}', space=sflag, size = 0x8, scoped, tag = 'scoped memory for tpu_custom_call.1']
    #allocation5 [shape = 'u8[16384]{0}', space=vmem, size = 0x4000, scoped, tag = 'output window, operand 0']
    %8 = vsyncpa [#allocation3], 0
    %s9 = scalar_lea.sflag [#allocation3], 1
    %10 = vsyncpa %s9, 0
    %11 = vsyncpa [#allocation4], 0
    %s12 = scalar_lea.sflag [#allocation4], 1
    %13 = vsyncpa %s12, 0
    loop: start=0, step=1, limit=4
    $region2: #{tpu_custom_call.1} parent=1 // loop_pre_header
      _
    $region3: #{tpu_custom_call.1} parent=1 // loop_header
      %s15 = sphi 0, %s19
      %p16 = scmp.ge.s32.totalorder %s15, 4
      %s22 = sphi 0, %s34
      %s23 = sphi 0, %s30
      %s24 = sphi 0, %s22
      %s25 = sphi 0, %s23
      %s26 = sphi 0, %s24
      %s27 = sphi 0, %s25
      %s39 = sphi 0, %s41
      %s42 = sphi 0, %s39
      %s43 = sphi 0, %s42
      %s59 = sphi 0, %s43
      %s63 = sphi 0, %s63
      %s65 = sphi 0, %s63
      %s66 = sphi 0, %s65
      %s80 = sphi 0, %s66
      %s84 = sphi 0, %s84
      %s86 = sphi 0, %s84
      %s87 = sphi 0, %s86
      %s101 = sphi 0, %s87
      %s109 = sphi 0, %s111
      %s112 = sphi 0, %s109
      %s113 = sphi 0, %s112
      %s129 = sphi 0, %s113
    $region4: #{tpu_custom_call.1} parent=1 // loop_header_branch
      %18 = sbr.rel (%p16) target = $region8
    $region5: #{tpu_custom_call.1} parent=1 // loop_body
      %s20 = ssub.s32 %s15, 1
      %s21 = ssub.s32 %s15, 2
      %s28 = sadd.s32 1, %s23
      %p29 = scmp.ge.s32.totalorder %s28, 2
      %s30 = scalar_select %p29, 0, %s28
      %s31 = sadd.s32 1, %s22
      %s32 = scalar_select %p29, %s31, %s22
      %p33 = scmp.ge.s32.totalorder %s32, 1
      %s34 = scalar_select %p33, 0, %s32
      %s35 = ssub.s32 %s22, %s34
      %s36 = ssub.s32 %s23, %s30
      %s37 = sor.u32 %s35, %s36
      %p38 = scmp.eq.s32.totalorder %s37, 0
      %s40 = sadd.s32 %s39, 1
      %s41 = scalar_select %p38, %s39, %s40
      %p44 = pneg %p38
      %p45 = scmp.eq.s32.totalorder %s15, 1
      %p46 = por %p44, %p45
      %p47 = scmp.ne.s32.totalorder %s39, %s42
      %p48 = scmp.eq.s32.totalorder %s15, 0
      %p49 = por %p47, %p48
      %p50 = scmp.ne.s32.totalorder %s39, %s42
      %p51 = scmp.eq.s32.totalorder %s20, 1
      %p52 = por %p50, %p51
      %p53 = scmp.ne.s32.totalorder %s42, %s43
      %p54 = scmp.eq.s32.totalorder %s20, 0
      %p55 = por %p53, %p54
      %p56 = scmp.ne.s32.totalorder %s42, %s43
      %p57 = scmp.eq.s32.totalorder %s21, 1
      %p58 = por %p56, %p57
      %p60 = scmp.ne.s32.totalorder %s43, %s59
      %p61 = scmp.eq.s32.totalorder %s21, 0
      %p62 = por %p60, %p61
      %s64 = sadd.s32 %s63, 1
      %p67 = scmp.eq.s32.totalorder %s15, 1
      %p68 = scmp.ne.s32.totalorder %s63, %s65
      %p69 = scmp.eq.s32.totalorder %s15, 0
      %p70 = por %p68, %p69
      %p71 = scmp.ne.s32.totalorder %s63, %s65
      %p72 = scmp.eq.s32.totalorder %s20, 1
      %p73 = por %p71, %p72
      %p74 = scmp.ne.s32.totalorder %s65, %s66
      %p75 = scmp.eq.s32.totalorder %s20, 0
      %p76 = por %p74, %p75
      %p77 = scmp.ne.s32.totalorder %s65, %s66
      %p78 = scmp.eq.s32.totalorder %s21, 1
      %p79 = por %p77, %p78
      %p81 = scmp.ne.s32.totalorder %s66, %s80
      %p82 = scmp.eq.s32.totalorder %s21, 0
      %p83 = por %p81, %p82
      %s85 = sadd.s32 %s84, 1
      %p88 = scmp.eq.s32.totalorder %s15, 1
      %p89 = scmp.ne.s32.totalorder %s84, %s86
      %p90 = scmp.eq.s32.totalorder %s15, 0
      %p91 = por %p89, %p90
      %p92 = scmp.ne.s32.totalorder %s84, %s86
      %p93 = scmp.eq.s32.totalorder %s20, 1
      %p94 = por %p92, %p93
      %p95 = scmp.ne.s32.totalorder %s86, %s87
      %p96 = scmp.eq.s32.totalorder %s20, 0
      %p97 = por %p95, %p96
      %p98 = scmp.ne.s32.totalorder %s86, %s87
      %p99 = scmp.eq.s32.totalorder %s21, 1
      %p100 = por %p98, %p99
      %p102 = scmp.ne.s32.totalorder %s87, %s101
      %p103 = scmp.eq.s32.totalorder %s21, 0
      %p104 = por %p102, %p103
      %s105 = ssub.s32 %s22, %s34
      %s106 = ssub.s32 %s23, %s30
      %s107 = sor.u32 %s105, %s106
      %p108 = scmp.eq.s32.totalorder %s107, 0
      %s110 = sadd.s32 %s109, 1
      %s111 = scalar_select %p108, %s109, %s110
      %p114 = pneg %p108
      %p115 = scmp.eq.s32.totalorder %s15, 1
      %p116 = por %p114, %p115
      %p117 = scmp.ne.s32.totalorder %s109, %s112
      %p118 = scmp.eq.s32.totalorder %s15, 0
      %p119 = por %p117, %p118
      %p120 = scmp.ne.s32.totalorder %s109, %s112
      %p121 = scmp.eq.s32.totalorder %s20, 1
      %p122 = por %p120, %p121
      %p123 = scmp.ne.s32.totalorder %s112, %s113
      %p124 = scmp.eq.s32.totalorder %s20, 0
      %p125 = por %p123, %p124
      %p126 = scmp.ne.s32.totalorder %s112, %s113
      %p127 = scmp.eq.s32.totalorder %s21, 1
      %p128 = por %p126, %p127
      %p130 = scmp.ne.s32.totalorder %s113, %s129
      %p131 = scmp.eq.s32.totalorder %s21, 0
      %p132 = por %p130, %p131
      %p133 = scmp.le.s32.totalorder 1, %s15
      %p134 = scmp.lt.s32.totalorder %s15, 3
      %p135 = pnand %p133, %p134
      %p136 = pneg %p135
      // Predicated region
      $region9: #{tpu_custom_call.1} parent=5 // pred_check
        _
      $region10: #{tpu_custom_call.1} parent=5 // pred_check_branch
        %138 = sbr.rel (%p135) target = $region12
      $region11: #{tpu_custom_call.1} parent=5 // pred_region
        %s139 = ssub.s32 %s15, 1
        // Predicated region
        $region13: #{tpu_custom_call.1} parent=11 // pred_check
          %p140 = pneg %p76
        $region14: #{tpu_custom_call.1} parent=11 // pred_check_branch
          %142 = sbr.rel (%p140) target = $region16
        $region15: #{tpu_custom_call.1} parent=11 // pred_region
          _
        $region16: #{tpu_custom_call.1} parent=11 // pred_fallthru
          _
        // Predicated region
        $region17: #{tpu_custom_call.1} parent=11 // pred_check
          %p143 = pneg %p97
        $region18: #{tpu_custom_call.1} parent=11 // pred_check_branch
          %145 = sbr.rel (%p143) target = $region20
        $region19: #{tpu_custom_call.1} parent=11 // pred_region
          _
        $region20: #{tpu_custom_call.1} parent=11 // pred_fallthru
          _
      $region12: #{tpu_custom_call.1} parent=5 // pred_fallthru
        _
      %p146 = scmp.lt.s32.totalorder %s15, 2
      // Predicated region
      $region21: #{tpu_custom_call.1} parent=5 // pred_check
        %p147 = pneg %p146
      $region22: #{tpu_custom_call.1} parent=5 // pred_check_branch
        %149 = sbr.rel (%p147) target = $region24
      $region23: #{tpu_custom_call.1} parent=5 // pred_region
        // Predicated region
        $region25: #{tpu_custom_call.1} parent=23 // pred_check
          %p150 = pneg %p49
        $region26: #{tpu_custom_call.1} parent=23 // pred_check_branch
          %152 = sbr.rel (%p150) target = $region28
        $region27: #{tpu_custom_call.1} parent=23 // pred_region
          %s153 = sand.u32 %s39, 1
          %s154 = scalar_lea.sflag [#allocation3], %s153
          %s155 = sand.u32 %s39, 1
          %s156 = smul.addr %s155, 16
          %s157 = scalar_lea.vmem [#allocation2], %s156
          %s158 = smul.u32 2, %s22
          %s160 = ssub.s32 256, 256
          %161 = vsyncadd %s154, %s160
          %s162 = smul.addr %s158, 4
          %s163 = sadd.s32 %s23, %s162
          %s164 = smul.addr %s163, 64
          %s165 = scalar_lea.hbm %s0, %s164
          %s166 = sshll.u32 %s157, 4
          %s167 = int_to_ptr.vmem [resolvable:$true] %s166
          %172 = dma.hbm_to_vmem [thread:$0]  %s165, 256, %s167, %s154, 128, 64, 4
        $region28: #{tpu_custom_call.1} parent=23 // pred_fallthru
          _
      $region24: #{tpu_custom_call.1} parent=5 // pred_fallthru
        _
      %p173 = scmp.le.s32.totalorder 1, %s15
      %p174 = scmp.lt.s32.totalorder %s15, 3
      %p175 = pnand %p173, %p174
      %p176 = pneg %p175
      // Predicated region
      $region29: #{tpu_custom_call.1} parent=5 // pred_check
        _
      $region30: #{tpu_custom_call.1} parent=5 // pred_check_branch
        %178 = sbr.rel (%p175) target = $region32
      $region31: #{tpu_custom_call.1} parent=5 // pred_region
        %s179 = ssub.s32 %s15, 1
        %s180 = sand.u32 %s42, 1
        %s181 = scalar_lea.sflag [#allocation3], %s180
        %s182 = sand.u32 %s42, 1
        %s183 = smul.addr %s182, 16
        %s184 = scalar_lea.vmem [#allocation2], %s183
        // Predicated region
        $region33: #{tpu_custom_call.1} parent=31 // pred_check
          %p185 = pneg %p55
        $region34: #{tpu_custom_call.1} parent=31 // pred_check_branch
          %187 = sbr.rel (%p185) target = $region36
        $region35: #{tpu_custom_call.1} parent=31 // pred_region
          %188 = dma.done %s181, 256
        $region36: #{tpu_custom_call.1} parent=31 // pred_fallthru
          _
        %s189 = sand.u32 %s42, 1
        %s190 = scalar_lea.sflag [#allocation3], %s189
        %s191 = sand.u32 %s42, 1
        %s192 = smul.addr %s191, 16
        %s193 = scalar_lea.vmem [#allocation2], %s192
        %p194 = pneg %p55
        %p195 = pneg %p52
        %p196 = pneg %p76
        %p197 = pneg %p73
        %p198 = pneg %p97
        %p199 = pneg %p94
        %p200 = pneg %p125
        %p201 = pneg %p122
        %s202 = sand.u32 %s112, 1
        %s203 = scalar_lea.sflag [#allocation4], %s202
        %s204 = sand.u32 %s112, 1
        %s205 = smul.addr %s204, 16
        %s206 = scalar_lea.vmem [#allocation5], %s205
        %s207 = smul.u32 2, %s24
        %s208 = smul.u32 2, %s24
        %v210 = vld [vmem:[%s1] sm:$0xf]
        %v211 = vld [vmem:[%s1 + $0x4] sm:$0xf]
        %v212 = vld [vmem:[%s2] sm:$0xff]
        %v213 = vld [vmem:[%s2 + $0x8] sm:$0xff]
        %v214 = vld [vmem:[%s184] sm:$0xf]
        %v215 = vld [vmem:[%s184 + $0x4] sm:$0xf]
        %217 = vset.pattern.permute.xlu0 0
        %218 = vperm.xlu0 %217, %v212
        %v219 = vpop.permute.xlu0 %218
        %222 = vset.pattern.permute.xlu0 0
        %223 = vperm.xlu0 %222, %v213
        %v224 = vpop.permute.xlu0 %223
        %v228 = vunpack.c.l.b16 %v210
        %v229 = vunpack.c.l.b16 %v211
        %v230 = vpack.c.b16 %v229, %v228
        %v233 = vunpack.c.l.b16 %v214
        %v234 = vunpack.c.l.b16 %v215
        %v235 = vpack.c.b16 %v234, %v233
        %vm237 = vcmask 130048
        %v239 = vsel %vm237, %v230, 0
        %241 = vmatprep.subr.bf16.mxu0 0
        %242 = vmatpush1.bf16.msra.mxu0 0
        %243 = vmatprep.subr.bf16.mxu0 0
        %244 = vmatpush1.bf16.msra.mxu0 0
        %245 = vmatprep.subr.bf16.mxu0 0
        %246 = vmatpush1.bf16.msra.mxu0 0
        %247 = vmatprep.subr.bf16.mxu0 0
        %248 = vmatpush1.bf16.msra.mxu0 0
        %249 = vmatprep.subr.bf16.mxu0 0
        %250 = vmatpush1.bf16.msra.mxu0 0
        %251 = vmatprep.subr.bf16.mxu0 0
        %252 = vmatpush1.bf16.msra.mxu0 0
        %253 = vmatprep.subr.bf16.mxu0 0
        %254 = vmatpush1.bf16.msra.mxu0 0
        %255 = vmatprep.subr.bf16.mxu0 0
        %256 = vmatpush1.bf16.msra.mxu0 %v235
        %257 = vmatprep.subr.bf16.mxu0 0
        %258 = vmatpush2.bf16.msra.mxu0 0
        %259 = vmatprep.subr.bf16.mxu0 0
        %260 = vmatpush2.bf16.msra.mxu0 0
        %261 = vmatprep.subr.bf16.mxu0 0
        %262 = vmatpush2.bf16.msra.mxu0 0
        %263 = vmatprep.subr.bf16.mxu0 0
        %264 = vmatpush2.bf16.msra.mxu0 0
        %265 = vmatprep.subr.bf16.mxu0 0
        %266 = vmatpush2.bf16.msra.mxu0 0
        %267 = vmatprep.subr.bf16.mxu0 0
        %268 = vmatpush2.bf16.msra.mxu0 0
        %269 = vmatprep.subr.bf16.mxu0 0
        %270 = vmatpush2.bf16.msra.mxu0 0
        %271 = vmatprep.subr.bf16.mxu0 0
        %272 = vmatpush2.bf16.msra.mxu0 0
        %273 = vmatprep.mubr.bf16.mxu0 0
        %274 = vmatmul.mubr.bf16.gmra.mxu0 %v239
        %v275 = vpop.f32.mrf.mxu0
        %v276 = vadd.f32 %v219, %v275
        %v277 = vpop.f32.mrf.mxu0
        %v278 = vpop.f32.mrf.mxu0
        %v279 = vadd.f32 %v224, %v278
        %v280 = vpop.f32.mrf.mxu0
        %281 = vdwg.mxu0
        %v282 = vmax.f32 %v276, 0.0
        %v283 = vmax.f32 %v279, 0.0
        %v284 = vpack.c.bf16 %v283, %v282
        %v286 = vunpack.c.l.b16 %v284
        %v287 = vunpack.c.h.b16 %v284
        %v288 = vpack.c.b16 %v286, %v286
        %v289 = vpack.c.b16 %v287, %v287
        %292 = vst [vmem:[%s206] sm:$0xf] %v288
        %293 = vst [vmem:[%s206 + $0x4] sm:$0xf] %v289
        %s294 = scalar_lea.vmem %s184, 8 [#allocation2]
        %v295 = vld [vmem:[%s294] sm:$0xf]
        %v296 = vld [vmem:[%s294 + $0x4] sm:$0xf]
        %v299 = vunpack.c.l.b16 %v295
        %v300 = vunpack.c.l.b16 %v296
        %v301 = vpack.c.b16 %v300, %v299
        %303 = vmatprep.subr.bf16.mxu0 0
        %304 = vmatpush1.bf16.msra.mxu0 0
        %305 = vmatprep.subr.bf16.mxu0 0
        %306 = vmatpush1.bf16.msra.mxu0 0
        %307 = vmatprep.subr.bf16.mxu0 0
        %308 = vmatpush1.bf16.msra.mxu0 0
        %309 = vmatprep.subr.bf16.mxu0 0
        %310 = vmatpush1.bf16.msra.mxu0 0
        %311 = vmatprep.subr.bf16.mxu0 0
        %312 = vmatpush1.bf16.msra.mxu0 0
        %313 = vmatprep.subr.bf16.mxu0 0
        %314 = vmatpush1.bf16.msra.mxu0 0
        %315 = vmatprep.subr.bf16.mxu0 0
        %316 = vmatpush1.bf16.msra.mxu0 0
        %317 = vmatprep.subr.bf16.mxu0 0
        %318 = vmatpush1.bf16.msra.mxu0 %v301
        %319 = vmatprep.subr.bf16.mxu0 0
        %320 = vmatpush2.bf16.msra.mxu0 0
        %321 = vmatprep.subr.bf16.mxu0 0
        %322 = vmatpush2.bf16.msra.mxu0 0
        %323 = vmatprep.subr.bf16.mxu0 0
        %324 = vmatpush2.bf16.msra.mxu0 0
        %325 = vmatprep.subr.bf16.mxu0 0
        %326 = vmatpush2.bf16.msra.mxu0 0
        %327 = vmatprep.subr.bf16.mxu0 0
        %328 = vmatpush2.bf16.msra.mxu0 0
        %329 = vmatprep.subr.bf16.mxu0 0
        %330 = vmatpush2.bf16.msra.mxu0 0
        %331 = vmatprep.subr.bf16.mxu0 0
        %332 = vmatpush2.bf16.msra.mxu0 0
        %333 = vmatprep.subr.bf16.mxu0 0
        %334 = vmatpush2.bf16.msra.mxu0 0
        %335 = vmatprep.mubr.bf16.mxu0 0
        %336 = vmatmul.mubr.bf16.gmra.mxu0 %v239
        %v337 = vpop.f32.mrf.mxu0
        %v338 = vadd.f32 %v219, %v337
        %v339 = vpop.f32.mrf.mxu0
        %v340 = vpop.f32.mrf.mxu0
        %v341 = vadd.f32 %v224, %v340
        %v342 = vpop.f32.mrf.mxu0
        %343 = vdwg.mxu0
        %v344 = vmax.f32 %v338, 0.0
        %v345 = vmax.f32 %v341, 0.0
        %v346 = vpack.c.bf16 %v345, %v344
        %v348 = vunpack.c.l.b16 %v346
        %v349 = vunpack.c.h.b16 %v346
        %v350 = vpack.c.b16 %v348, %v348
        %v351 = vpack.c.b16 %v349, %v349
        %s354 = scalar_lea.vmem %s206, 8 [#allocation5]
        %355 = vst [vmem:[%s354] sm:$0xf] %v350
        %356 = vst [vmem:[%s354 + $0x4] sm:$0xf] %v351
        %s357 = sand.u32 %s112, 1
        %s358 = scalar_lea.sflag [#allocation4], %s357
        %s359 = sand.u32 %s112, 1
        %s360 = smul.addr %s359, 16
        %s361 = scalar_lea.vmem [#allocation5], %s360
        // Predicated region
        $region37: #{tpu_custom_call.1} parent=31 // pred_check
          %p362 = pneg %p122
        $region38: #{tpu_custom_call.1} parent=31 // pred_check_branch
          %364 = sbr.rel (%p362) target = $region40
        $region39: #{tpu_custom_call.1} parent=31 // pred_region
          %s365 = smul.u32 2, %s24
          %s367 = ssub.s32 256, 256
          %368 = vsyncadd %s358, %s367
          %s369 = smul.addr %s365, 4
          %s370 = sadd.s32 %s25, %s369
          %s371 = smul.addr %s370, 64
          %s372 = scalar_lea.hbm %s3, %s371
          %s373 = sshll.u32 %s361, 4
          %s374 = int_to_ptr.vmem [resolvable:$true] %s373
          %379 = dma.vmem_to_hbm [thread:$0]  %s374, 256, %s372, %s358, 64, 128, 4
        $region40: #{tpu_custom_call.1} parent=31 // pred_fallthru
          _
      $region32: #{tpu_custom_call.1} parent=5 // pred_fallthru
        _
      %p380 = scmp.le.s32.totalorder 2, %s15
      // Predicated region
      $region41: #{tpu_custom_call.1} parent=5 // pred_check
        %p381 = pneg %p380
      $region42: #{tpu_custom_call.1} parent=5 // pred_check_branch
        %383 = sbr.rel (%p381) target = $region44
      $region43: #{tpu_custom_call.1} parent=5 // pred_region
        %s384 = ssub.s32 %s15, 2
        // Predicated region
        $region45: #{tpu_custom_call.1} parent=43 // pred_check
          %p385 = pneg %p128
        $region46: #{tpu_custom_call.1} parent=43 // pred_check_branch
          %387 = sbr.rel (%p385) target = $region48
        $region47: #{tpu_custom_call.1} parent=43 // pred_region
          %s388 = sand.u32 %s113, 1
          %s389 = scalar_lea.sflag [#allocation4], %s388
          %s390 = sand.u32 %s113, 1
          %s391 = smul.addr %s390, 16
          %s392 = scalar_lea.vmem [#allocation5], %s391
          %393 = dma.done %s389, 256
        $region48: #{tpu_custom_call.1} parent=43 // pred_fallthru
          _
      $region44: #{tpu_custom_call.1} parent=5 // pred_fallthru
        _
    $region6: #{tpu_custom_call.1} parent=1 // loop_footer
      %s19 = sadd.s32 1, %s15
    $region7: #{tpu_custom_call.1} parent=1 // loop_footer_branch
      %14 = sbr.rel target = $region3
    $region8: #{tpu_custom_call.1} parent=1 // loop_exit
      _
    %394 = vsyncpa [#allocation3], 1
    %s395 = scalar_lea.sflag [#allocation3], 1
    %396 = vsyncpa %s395, 1
    %397 = vsyncpa [#allocation4], 1
    %s398 = scalar_lea.sflag [#allocation4], 1
    %399 = vsyncpa %s398, 1

</llo_original>
